<compile_context>
chip_gen: v7x
topology: tpu7x:2x2x1
jax: 0.10.0
libtpu: 0.0.40
codegen_flags: <defaults>
</compile_context>

<pallas_src>
import math
import jax
import jax.numpy as jnp
from jax.experimental import pallas as pl
from jax.experimental.pallas import tpu as pltpu


def ffn_kernel(x_ref, w1_ref, b1_ref, w2_ref, b2_ref, gamma_ref, beta_ref, o_ref):
    # x tile: (tm, d_in), native dtype (bf16 or f32) -> MXU operand as-is.
    x_in = x_ref[...]
    x_f32 = x_in.astype(jnp.float32)  # residual path in f32

    # Hoisted parameter loads (read once per tile).
    b1 = b1_ref[...].astype(jnp.float32)
    b2 = b2_ref[...].astype(jnp.float32)
    gamma = gamma_ref[...].astype(jnp.float32)
    beta = beta_ref[...].astype(jnp.float32)

    # ---- w_1: (tm, d_in) @ (d_in, d_hid), f32 accumulator ----
    h = jnp.dot(x_in, w1_ref[...], preferred_element_type=jnp.float32) + b1

    # ---- GELU (tanh approximation, exactly as in the PyTorch GELU module), f32 ----
    c = math.sqrt(2.0 / math.pi)
    h = 0.5 * h * (1.0 + jnp.tanh(c * (h + 0.044715 * (h * h * h))))

    # ---- w_2: (tm, d_hid) @ (d_hid, d_in), f32 accumulator ----
    # Cast the activation back to the weight dtype so bf16 weights use the fast
    # bf16 MXU path; accumulation stays in f32.
    y = jnp.dot(h.astype(w2_ref.dtype), w2_ref[...],
                preferred_element_type=jnp.float32) + b2

    # TODO(synk): dropout(p=0.1) is a no-op at inference; training-mode dropout
    # would need pltpu.prng_seed + prng_random_bits and is omitted here.

    # ---- residual add (f32) ----
    y = y + x_f32

    # ---- LayerNorm over last dim, eps=1e-6 ----
    mean = jnp.mean(y, axis=-1, keepdims=True)
    var = jnp.mean((y - mean) * (y - mean), axis=-1, keepdims=True)
    y_norm = (y - mean) * jax.lax.rsqrt(var + 1e-6)
    out = y_norm * gamma + beta

    o_ref[...] = out.astype(o_ref.dtype)


def _round_up(n, m):
    return ((n + m - 1) // m) * m


def positionwise_feed_forward(x, w1, b1, w2, b2, gamma, beta, *, tm=None):
    """x: (B, S, d_in)  ->  (B, S, d_in)"""
    B, S, d_in = x.shape
    d_hid = w1.shape[1]
    rows = B * S

    # --- choose a large row tile (multiple of 8, capped at 512) and pad rows ---
    if tm is None:
        tm = min(512, _round_up(rows, 8))
    tm = max(8, _round_up(tm, 8))
    rows_padded = _round_up(rows, tm)

    x2d = x.reshape(rows, d_in)
    if rows_padded != rows:
        x2d = jnp.pad(x2d, ((0, rows_padded - rows), (0, 0)))

    # Keep biases / LN params 2-D (1, D) so they broadcast over the row tile.
    b1_2d = b1.reshape(1, d_hid)
    b2_2d = b2.reshape(1, d_in)
    gamma_2d = gamma.reshape(1, d_in)
    beta_2d = beta.reshape(1, d_in)

    grid = (rows_padded // tm,)

    # --- explicit VMEM budget for the chosen tile sizes ---
    def _nbytes(shape, dtype):
        n = 1
        for s in shape:
            n *= s
        return n * jnp.dtype(dtype).itemsize

    footprint = (
        2 * _nbytes((tm, d_in), x.dtype)            # x tile, double-buffered
        + 2 * _nbytes((tm, d_in), x.dtype)          # out tile, double-buffered
        + 2 * (_nbytes((d_in, d_hid), w1.dtype)     # resident weights / params
               + _nbytes((d_hid, d_in), w2.dtype)
               + _nbytes((1, d_hid), b1.dtype)
               + 3 * _nbytes((1, d_in), b2.dtype))
        + _nbytes((tm, d_hid), jnp.float32)         # f32 hidden intermediate
        + _nbytes((tm, d_in), jnp.float32)          # f32 residual / LN temporaries
    )
    vmem_limit = int(min(max(int(footprint * 2) + (4 << 20), 16 << 20), 120 << 20))

    out2d = pl.pallas_call(
        ffn_kernel,
        out_shape=jax.ShapeDtypeStruct((rows_padded, d_in), x.dtype),
        grid_spec=pltpu.PrefetchScalarGridSpec(
            num_scalar_prefetch=0,
            grid=grid,
            in_specs=[
                pl.BlockSpec((tm, d_in), lambda i: (i, 0)),      # x tile
                pl.BlockSpec((d_in, d_hid), lambda i: (0, 0)),   # w1 (resident)
                pl.BlockSpec((1, d_hid), lambda i: (0, 0)),      # b1
                pl.BlockSpec((d_hid, d_in), lambda i: (0, 0)),   # w2 (resident)
                pl.BlockSpec((1, d_in), lambda i: (0, 0)),       # b2
                pl.BlockSpec((1, d_in), lambda i: (0, 0)),       # gamma
                pl.BlockSpec((1, d_in), lambda i: (0, 0)),       # beta
            ],
            out_specs=pl.BlockSpec((tm, d_in), lambda i: (i, 0)),
        ),
        compiler_params=pltpu.CompilerParams(
            dimension_semantics=("parallel",),
            vmem_limit_bytes=vmem_limit,
        ),
    )(x2d, w1, b1_2d, w2, b2_2d, gamma_2d, beta_2d)

    if rows_padded != rows:
        out2d = out2d[:rows]
    return out2d.reshape(B, S, d_in)


def _reference(x, w1, b1, w2, b2, gamma, beta):
    """Pure-JAX reference for correctness check."""
    c = math.sqrt(2.0 / math.pi)
    h = x.astype(jnp.float32) @ w1.astype(jnp.float32) + b1.astype(jnp.float32)
    h = 0.5 * h * (1.0 + jnp.tanh(c * (h + 0.044715 * h ** 3)))
    y = h @ w2.astype(jnp.float32) + b2.astype(jnp.float32)
    y = y + x.astype(jnp.float32)
    mean = jnp.mean(y, axis=-1, keepdims=True)
    var = jnp.mean((y - mean) ** 2, axis=-1, keepdims=True)
    return ((y - mean) * jax.lax.rsqrt(var + 1e-6)) * gamma + beta


if __name__ == "__main__":
    # Small shapes consistent with the module: (batch, seq, d_in), hidden d_hid.
    B, S, d_in, d_hid = 2, 8, 32, 64

    key = jax.random.PRNGKey(0)
    kx, k1, kb1, k2, kb2 = jax.random.split(key, 5)

    x = jax.random.normal(kx, (B, S, d_in), dtype=jnp.float32)

    # Deterministic parameter init (Linear-style uniform fan-in scaling).
    lim1 = 1.0 / math.sqrt(d_in)
    lim2 = 1.0 / math.sqrt(d_hid)
    w1 = jax.random.uniform(k1, (d_in, d_hid), jnp.float32, -lim1, lim1)
    b1 = jax.random.uniform(kb1, (d_hid,), jnp.float32, -lim1, lim1)
    w2 = jax.random.uniform(k2, (d_hid, d_in), jnp.float32, -lim2, lim2)
    b2 = jax.random.uniform(kb2, (d_in,), jnp.float32, -lim2, lim2)
    gamma = jnp.ones((d_in,), jnp.float32)
    beta = jnp.zeros((d_in,), jnp.float32)

    out = positionwise_feed_forward(x, w1, b1, w2, b2, gamma, beta)
    out = jax.block_until_ready(out)

    ref = _reference(x, w1, b1, w2, b2, gamma, beta)
    assert out.shape == (B, S, d_in)
    assert jnp.allclose(out, ref, atol=1e-5, rtol=1e-5), "mismatch vs reference"

    print("KERNEL_OK")
</pallas_src>

<mosaic_0001>
module attributes {stable_mosaic.version = 11 : i64} {
  func.func @ffn_kernel(%arg0: i32, %arg1: memref<16x32xf32, #tpu.memory_space<vmem>>, %arg2: memref<32x64xf32, #tpu.memory_space<vmem>>, %arg3: memref<1x64xf32, #tpu.memory_space<vmem>>, %arg4: memref<64x32xf32, #tpu.memory_space<vmem>>, %arg5: memref<1x32xf32, #tpu.memory_space<vmem>>, %arg6: memref<1x32xf32, #tpu.memory_space<vmem>>, %arg7: memref<1x32xf32, #tpu.memory_space<vmem>>, %arg8: memref<16x32xf32, #tpu.memory_space<vmem>>) attributes {dimension_semantics = [#tpu.dimension_semantics<parallel>], iteration_bounds = array<i64: 1>, scalar_prefetch = 0 : i64, scratch_operands = 0 : i64, tpu.core_type = #tpu.core_type<tc>, window_params = [{transform_indices = @transform_0, window_bounds = array<i64: 16, 32>}, {pipeline_mode = #tpu.pipeline_mode<synchronous>, transform_indices = @transform_1, window_bounds = array<i64: 32, 64>}, {pipeline_mode = #tpu.pipeline_mode<synchronous>, transform_indices = @transform_2, window_bounds = array<i64: 1, 64>}, {pipeline_mode = #tpu.pipeline_mode<synchronous>, transform_indices = @transform_3, window_bounds = array<i64: 64, 32>}, {pipeline_mode = #tpu.pipeline_mode<synchronous>, transform_indices = @transform_4, window_bounds = array<i64: 1, 32>}, {pipeline_mode = #tpu.pipeline_mode<synchronous>, transform_indices = @transform_5, window_bounds = array<i64: 1, 32>}, {pipeline_mode = #tpu.pipeline_mode<synchronous>, transform_indices = @transform_6, window_bounds = array<i64: 1, 32>}, {transform_indices = @transform_7, window_bounds = array<i64: 16, 32>}]} {
    %c0 = arith.constant 0 : index
    %c0_0 = arith.constant 0 : index
    %0 = vector.load %arg1[%c0, %c0_0] : memref<16x32xf32, #tpu.memory_space<vmem>>, vector<16x32xf32>
    %c0_1 = arith.constant 0 : index
    %c0_2 = arith.constant 0 : index
    %1 = vector.load %arg3[%c0_1, %c0_2] : memref<1x64xf32, #tpu.memory_space<vmem>>, vector<1x64xf32>
    %c0_3 = arith.constant 0 : index
    %c0_4 = arith.constant 0 : index
    %2 = vector.load %arg5[%c0_3, %c0_4] : memref<1x32xf32, #tpu.memory_space<vmem>>, vector<1x32xf32>
    %c0_5 = arith.constant 0 : index
    %c0_6 = arith.constant 0 : index
    %3 = vector.load %arg6[%c0_5, %c0_6] : memref<1x32xf32, #tpu.memory_space<vmem>>, vector<1x32xf32>
    %c0_7 = arith.constant 0 : index
    %c0_8 = arith.constant 0 : index
    %4 = vector.load %arg7[%c0_7, %c0_8] : memref<1x32xf32, #tpu.memory_space<vmem>>, vector<1x32xf32>
    %c0_9 = arith.constant 0 : index
    %c0_10 = arith.constant 0 : index
    %5 = vector.load %arg2[%c0_9, %c0_10] : memref<32x64xf32, #tpu.memory_space<vmem>>, vector<32x64xf32>
    %cst = arith.constant dense<0.000000e+00> : vector<16x64xf32>
    %6 = tpu.matmul %0, %5, %cst {dimension_numbers = #tpu.dot_dimension_numbers<[1], [0], [0], [1], [0, 0, 1, 1], [], []>} : vector<16x32xf32>, vector<32x64xf32>, vector<16x64xf32> -> vector<16x64xf32>
    %7 = vector.broadcast %1 : vector<1x64xf32> to vector<16x64xf32>
    %8 = arith.addf %6, %7 : vector<16x64xf32>
    %cst_11 = arith.constant 5.000000e-01 : f32
    %9 = vector.broadcast %cst_11 : f32 to vector<16x64xf32>
    %10 = arith.mulf %9, %8 : vector<16x64xf32>
    %11 = arith.mulf %8, %8 : vector<16x64xf32>
    %12 = arith.mulf %11, %8 : vector<16x64xf32>
    %cst_12 = arith.constant 4.471500e-02 : f32
    %13 = vector.broadcast %cst_12 : f32 to vector<16x64xf32>
    %14 = arith.mulf %13, %12 : vector<16x64xf32>
    %15 = arith.addf %8, %14 : vector<16x64xf32>
    %cst_13 = arith.constant 0.797884583 : f32
    %16 = vector.broadcast %cst_13 : f32 to vector<16x64xf32>
    %17 = arith.mulf %16, %15 : vector<16x64xf32>
    %18 = math.tanh %17 : vector<16x64xf32>
    %cst_14 = arith.constant 1.000000e+00 : f32
    %19 = vector.broadcast %cst_14 : f32 to vector<16x64xf32>
    %20 = arith.addf %19, %18 : vector<16x64xf32>
    %21 = arith.mulf %10, %20 : vector<16x64xf32>
    %c0_15 = arith.constant 0 : index
    %c0_16 = arith.constant 0 : index
    %22 = vector.load %arg4[%c0_15, %c0_16] : memref<64x32xf32, #tpu.memory_space<vmem>>, vector<64x32xf32>
    %cst_17 = arith.constant dense<0.000000e+00> : vector<16x32xf32>
    %23 = tpu.matmul %21, %22, %cst_17 {dimension_numbers = #tpu.dot_dimension_numbers<[1], [0], [0], [1], [0, 0, 1, 1], [], []>} : vector<16x64xf32>, vector<64x32xf32>, vector<16x32xf32> -> vector<16x32xf32>
    %24 = vector.broadcast %2 : vector<1x32xf32> to vector<16x32xf32>
    %25 = arith.addf %23, %24 : vector<16x32xf32>
    %26 = arith.addf %25, %0 : vector<16x32xf32>
    %cst_18 = arith.constant dense<0.000000e+00> : vector<16xf32>
    %27 = vector.multi_reduction <add>, %26, %cst_18 [1] : vector<16x32xf32> to vector<16xf32>
    %28 = vector.shape_cast %27 : vector<16xf32> to vector<16x1xf32>
    %cst_19 = arith.constant 3.200000e+01 : f32
    %29 = vector.broadcast %cst_19 : f32 to vector<16x1xf32>
    %30 = arith.divf %28, %29 : vector<16x1xf32>
    %31 = vector.broadcast %30 : vector<16x1xf32> to vector<16x32xf32>
    %32 = arith.subf %26, %31 : vector<16x32xf32>
    %33 = vector.broadcast %30 : vector<16x1xf32> to vector<16x32xf32>
    %34 = arith.subf %26, %33 : vector<16x32xf32>
    %35 = arith.mulf %32, %34 : vector<16x32xf32>
    %cst_20 = arith.constant dense<0.000000e+00> : vector<16xf32>
    %36 = vector.multi_reduction <add>, %35, %cst_20 [1] : vector<16x32xf32> to vector<16xf32>
    %37 = vector.shape_cast %36 : vector<16xf32> to vector<16x1xf32>
    %cst_21 = arith.constant 3.200000e+01 : f32
    %38 = vector.broadcast %cst_21 : f32 to vector<16x1xf32>
    %39 = arith.divf %37, %38 : vector<16x1xf32>
    %40 = vector.broadcast %30 : vector<16x1xf32> to vector<16x32xf32>
    %41 = arith.subf %26, %40 : vector<16x32xf32>
    %cst_22 = arith.constant 9.99999997E-7 : f32
    %42 = vector.broadcast %cst_22 : f32 to vector<16x1xf32>
    %43 = arith.addf %39, %42 : vector<16x1xf32>
    %44 = math.rsqrt %43 : vector<16x1xf32>
    %45 = vector.broadcast %44 : vector<16x1xf32> to vector<16x32xf32>
    %46 = arith.mulf %41, %45 : vector<16x32xf32>
    %47 = vector.broadcast %3 : vector<1x32xf32> to vector<16x32xf32>
    %48 = arith.mulf %46, %47 : vector<16x32xf32>
    %49 = vector.broadcast %4 : vector<1x32xf32> to vector<16x32xf32>
    %50 = arith.addf %48, %49 : vector<16x32xf32>
    %c0_23 = arith.constant 0 : index
    %c0_24 = arith.constant 0 : index
    %51 = vector.load %arg8[%c0_23, %c0_24] : memref<16x32xf32, #tpu.memory_space<vmem>>, vector<16x32xf32>
    tpu.vector_store %arg8[%c0_23, %c0_24], %50 {strides = array<i32>} : memref<16x32xf32, #tpu.memory_space<vmem>>, vector<16x32xf32>,
    return
  }
  func.func @transform_0(%arg0: i32) -> (i32, i32) {
    %c0_i32 = arith.constant 0 : i32
    %c0_i32_0 = arith.constant 0 : i32
    return %arg0, %c0_i32 : i32, i32
  }
  func.func @transform_1(%arg0: i32) -> (i32, i32) {
    %c0_i32 = arith.constant 0 : i32
    %c0_i32_0 = arith.constant 0 : i32
    %c0_i32_1 = arith.constant 0 : i32
    return %c0_i32, %c0_i32_0 : i32, i32
  }
  func.func @transform_2(%arg0: i32) -> (i32, i32) {
    %c0_i32 = arith.constant 0 : i32
    %c0_i32_0 = arith.constant 0 : i32
    %c0_i32_1 = arith.constant 0 : i32
    return %c0_i32, %c0_i32_0 : i32, i32
  }
  func.func @transform_3(%arg0: i32) -> (i32, i32) {
    %c0_i32 = arith.constant 0 : i32
    %c0_i32_0 = arith.constant 0 : i32
    %c0_i32_1 = arith.constant 0 : i32
    return %c0_i32, %c0_i32_0 : i32, i32
  }
  func.func @transform_4(%arg0: i32) -> (i32, i32) {
    %c0_i32 = arith.constant 0 : i32
    %c0_i32_0 = arith.constant 0 : i32
    %c0_i32_1 = arith.constant 0 : i32
    return %c0_i32, %c0_i32_0 : i32, i32
  }
  func.func @transform_5(%arg0: i32) -> (i32, i32) {
    %c0_i32 = arith.constant 0 : i32
    %c0_i32_0 = arith.constant 0 : i32
    %c0_i32_1 = arith.constant 0 : i32
    return %c0_i32, %c0_i32_0 : i32, i32
  }
  func.func @transform_6(%arg0: i32) -> (i32, i32) {
    %c0_i32 = arith.constant 0 : i32
    %c0_i32_0 = arith.constant 0 : i32
    %c0_i32_1 = arith.constant 0 : i32
    return %c0_i32, %c0_i32_0 : i32, i32
  }
  func.func @transform_7(%arg0: i32) -> (i32, i32) {
    %c0_i32 = arith.constant 0 : i32
    %c0_i32_0 = arith.constant 0 : i32
    return %arg0, %c0_i32 : i32, i32
  }
}

</mosaic_0001>

<llo_original>
// kernel: tpu_custom_call.1
$region0: #{tpu_custom_call.1}
  #allocation0 [shape = 'u32[]', space=smem, size = 0x4, offset = 0x4, fixed_abs, tag = 'smem constant byte address 0x4 - core index']
  #allocation1 [shape = 'u32[144,128]{1,0:T(1,128)}', space=vmem, size = 0x12000, scoped, tag = 'internal scratch']
  %s0 = inlined_call_operand.vmem [shape: f32[16,32], index: 0, kind: input, shape index: {}]
  %s1 = inlined_call_operand.vmem [shape: f32[32,64], index: 1, kind: input, shape index: {}]
  %s2 = inlined_call_operand.vmem [shape: f32[1,64], index: 2, kind: input, shape index: {}]
  %s3 = inlined_call_operand.vmem [shape: f32[64,32], index: 3, kind: input, shape index: {}]
  %s4 = inlined_call_operand.vmem [shape: f32[1,32], index: 4, kind: input, shape index: {}]
  %s5 = inlined_call_operand.vmem [shape: f32[1,32], index: 5, kind: input, shape index: {}]
  %s6 = inlined_call_operand.vmem [shape: f32[1,32], index: 6, kind: input, shape index: {}]
  %s7 = inlined_call_operand.hbm [shape: f32[16,32], index: 7, kind: output, shape index: {}]
  %s8 = sld [smem:[#allocation0]]
  $region38: #{tpu_custom_call.1} parent=0
    _
  %s10 = ssub.s32 1, %s8
  %s11 = scalar_select 0, %s10, %s8
  $region1: #{tpu_custom_call.1} parent=0
    #allocation2 [shape = 'u8[8192]{0}', space=vmem, size = 0x2000, scoped, tag = 'output window, operand 0, single buffered']
    #allocation3 [shape = 's32[1]{0}', space=sflag, size = 0x4, scoped, tag = 'scoped memory for tpu_custom_call.1']
    %12 = vsyncpa [#allocation3], 0
    // Predicated region
    $region2: #{tpu_custom_call.1} parent=1 // pred_check
      _
    $region3: #{tpu_custom_call.1} parent=1 // pred_check_branch
      %14 = sbr.rel (0) target = $region5
    $region4: #{tpu_custom_call.1} parent=1 // pred_region
      _
    $region5: #{tpu_custom_call.1} parent=1 // pred_fallthru
      _
    // Predicated region
    $region6: #{tpu_custom_call.1} parent=1 // pred_check
      _
    $region7: #{tpu_custom_call.1} parent=1 // pred_check_branch
      %16 = sbr.rel (0) target = $region9
    $region8: #{tpu_custom_call.1} parent=1 // pred_region
      _
    $region9: #{tpu_custom_call.1} parent=1 // pred_fallthru
      _
    // Predicated region
    $region10: #{tpu_custom_call.1} parent=1 // pred_check
      _
    $region11: #{tpu_custom_call.1} parent=1 // pred_check_branch
      %18 = sbr.rel (0) target = $region13
    $region12: #{tpu_custom_call.1} parent=1 // pred_region
      _
    $region13: #{tpu_custom_call.1} parent=1 // pred_fallthru
      _
    // Predicated region
    $region14: #{tpu_custom_call.1} parent=1 // pred_check
      _
    $region15: #{tpu_custom_call.1} parent=1 // pred_check_branch
      %20 = sbr.rel (0) target = $region17
    $region16: #{tpu_custom_call.1} parent=1 // pred_region
      _
    $region17: #{tpu_custom_call.1} parent=1 // pred_fallthru
      _
    // Predicated region
    $region18: #{tpu_custom_call.1} parent=1 // pred_check
      _
    $region19: #{tpu_custom_call.1} parent=1 // pred_check_branch
      %22 = sbr.rel (0) target = $region21
    $region20: #{tpu_custom_call.1} parent=1 // pred_region
      _
    $region21: #{tpu_custom_call.1} parent=1 // pred_fallthru
      _
    // Predicated region
    $region22: #{tpu_custom_call.1} parent=1 // pred_check
      _
    $region23: #{tpu_custom_call.1} parent=1 // pred_check_branch
      %24 = sbr.rel (0) target = $region25
    $region24: #{tpu_custom_call.1} parent=1 // pred_region
      _
    $region25: #{tpu_custom_call.1} parent=1 // pred_fallthru
      _
    // Predicated region
    $region26: #{tpu_custom_call.1} parent=1 // pred_check
      _
    $region27: #{tpu_custom_call.1} parent=1 // pred_check_branch
      %26 = sbr.rel (0) target = $region29
    $region28: #{tpu_custom_call.1} parent=1 // pred_region
      _
    $region29: #{tpu_custom_call.1} parent=1 // pred_fallthru
      _
    %v27 = vld [vmem:[%s0] sm:$0xff]
    %v28 = vld [vmem:[%s0 + $0x8] sm:$0xff]
    %v29 = vld [vmem:[%s2] sm:$0x1]
    %v30 = vld [vmem:[%s4] sm:$0x1]
    %v31 = vld [vmem:[%s5] sm:$0x1]
    %v32 = vld [vmem:[%s6] sm:$0x1]
    %v33 = vld [vmem:[%s1] sm:$0xff]
    %v34 = vld [vmem:[%s1 + $0x8] sm:$0xff]
    %v35 = vld [vmem:[%s1 + $0x10] sm:$0xff]
    %v36 = vld [vmem:[%s1 + $0x18] sm:$0xff]
    %v38 = vlaneseq
    %v39 = vshrl.u32 %v38, 7
    %v40 = vsub.s32 0, %v39
    %v41 = vrot.slane %v29, %v40
    %vm43 = vcmask 261120
    %v45 = vsel %vm43, %v27, 0
    %v48 = vsel %vm43, %v28, 0
    %50 = vmatprep.subr.mxu0 0.0
    %51 = vmatpush1.msra.mxu0 %v33
    %52 = vmatprep.subr.mxu0 0.0
    %53 = vmatpush1.msra.mxu0 %v34
    %54 = vmatprep.subr.mxu0 0.0
    %55 = vmatpush1.msra.mxu0 %v35
    %56 = vmatprep.subr.mxu0 0.0
    %57 = vmatpush1.msra.mxu0 %v36
    %58 = vmatprep.subr.mxu0 0.0
    %59 = vmatpush1.msra.mxu0 0.0
    %60 = vmatprep.subr.mxu0 0.0
    %61 = vmatpush1.msra.mxu0 0.0
    %62 = vmatprep.subr.mxu0 0.0
    %63 = vmatpush1.msra.mxu0 0.0
    %64 = vmatprep.subr.mxu0 0.0
    %65 = vmatpush1.msra.mxu0 0.0
    %66 = vmatprep.subr.mxu0 0.0
    %67 = vmatpush1.msra.mxu0 0.0
    %68 = vmatprep.subr.mxu0 0.0
    %69 = vmatpush1.msra.mxu0 0.0
    %70 = vmatprep.subr.mxu0 0.0
    %71 = vmatpush1.msra.mxu0 0.0
    %72 = vmatprep.subr.mxu0 0.0
    %73 = vmatpush1.msra.mxu0 0.0
    %74 = vmatprep.subr.mxu0 0.0
    %75 = vmatpush1.msra.mxu0 0.0
    %76 = vmatprep.subr.mxu0 0.0
    %77 = vmatpush1.msra.mxu0 0.0
    %78 = vmatprep.subr.mxu0 0.0
    %79 = vmatpush1.msra.mxu0 0.0
    %80 = vmatprep.subr.mxu0 0.0
    %81 = vmatpush1.msra.mxu0 0.0
    %82 = vmatprep.subr.mxu0 0.0
    %83 = vmatpush1.msra.mxu0 0.0
    %84 = vmatprep.subr.mxu0 0.0
    %85 = vmatpush1.msra.mxu0 0.0
    %86 = vmatprep.subr.mxu0 0.0
    %87 = vmatpush1.msra.mxu0 0.0
    %88 = vmatprep.subr.mxu0 0.0
    %89 = vmatpush1.msra.mxu0 0.0
    %90 = vmatprep.subr.mxu0 0.0
    %91 = vmatpush1.msra.mxu0 0.0
    %92 = vmatprep.subr.mxu0 0.0
    %93 = vmatpush1.msra.mxu0 0.0
    %94 = vmatprep.subr.mxu0 0.0
    %95 = vmatpush1.msra.mxu0 0.0
    %96 = vmatprep.subr.mxu0 0.0
    %97 = vmatpush1.msra.mxu0 0.0
    %98 = vmatprep.subr.mxu0 0.0
    %99 = vmatpush1.msra.mxu0 0.0
    %100 = vmatprep.subr.mxu0 0.0
    %101 = vmatpush1.msra.mxu0 0.0
    %102 = vmatprep.subr.mxu0 0.0
    %103 = vmatpush1.msra.mxu0 0.0
    %104 = vmatprep.subr.mxu0 0.0
    %105 = vmatpush1.msra.mxu0 0.0
    %106 = vmatprep.subr.mxu0 0.0
    %107 = vmatpush1.msra.mxu0 0.0
    %108 = vmatprep.subr.mxu0 0.0
    %109 = vmatpush1.msra.mxu0 0.0
    %110 = vmatprep.subr.mxu0 0.0
    %111 = vmatpush1.msra.mxu0 0.0
    %112 = vmatprep.subr.mxu0 0.0
    %113 = vmatpush1.msra.mxu0 0.0
    %114 = vmatprep.mubr.f32.mxu0 0.0
    %115 = vmatmul.mubr.f32.gmra.mrb[0].mxu0 %v45
    %v116 = vpop.f32.mrb[0].mxu0
    %v117 = vadd.f32 %v41, %v116
    %v118 = vpop.f32.mrb[0].mxu0
    %119 = vmatprep.mubr.f32.mxu0 0.0
    %120 = vmatmul.mubr.f32.gmra.mrb[0].mxu0 %v48
    %v121 = vpop.f32.mrb[0].mxu0
    %v122 = vadd.f32 %v41, %v121
    %v123 = vpop.f32.mrb[0].mxu0
    %124 = vdwg.mxu0
    %v125 = vmul.f32 %v117, 0.5
    %v126 = vmul.f32 %v122, 0.5
    %v127 = vmul.f32 %v117, %v117
    %v128 = vmul.f32 %v122, %v122
    %v129 = vmul.f32 %v127, %v117
    %v130 = vmul.f32 %v128, %v122
    %v131 = vmul.f32 %v129, 0.044715
    %v132 = vmul.f32 %v130, 0.044715
    %v133 = vadd.f32 %v117, %v131
    %v134 = vadd.f32 %v122, %v132
    %v135 = vmul.f32 %v133, 0.7978846
    %v136 = vmul.f32 %v134, 0.7978846
    %v137 = vtanh.pop %v135
    %v138 = vtanh.pop %v136
    %v139 = vadd.f32 %v137, 1.0
    %v140 = vadd.f32 %v138, 1.0
    %v141 = vmul.f32 %v125, %v139
    %v142 = vmul.f32 %v126, %v140
    %v143 = vld [vmem:[%s3] sm:$0xff]
    %v144 = vld [vmem:[%s3 + $0x8] sm:$0xff]
    %v145 = vld [vmem:[%s3 + $0x10] sm:$0xff]
    %v146 = vld [vmem:[%s3 + $0x18] sm:$0xff]
    %v147 = vld [vmem:[%s3 + $0x20] sm:$0xff]
    %v148 = vld [vmem:[%s3 + $0x28] sm:$0xff]
    %v149 = vld [vmem:[%s3 + $0x30] sm:$0xff]
    %v150 = vld [vmem:[%s3 + $0x38] sm:$0xff]
    %v152 = vlaneseq
    %v153 = vshrl.u32 %v152, 7
    %v154 = vsub.s32 0, %v153
    %v155 = vrot.slane %v30, %v154
    %vm157 = vcmask 523264
    %v159 = vsel %vm157, %v141, 0
    %v162 = vsel %vm157, %v142, 0
    %164 = vmatprep.subr.mxu0 0.0
    %165 = vmatpush1.msra.mxu0 %v143
    %166 = vmatprep.subr.mxu0 0.0
    %167 = vmatpush1.msra.mxu0 %v144
    %168 = vmatprep.subr.mxu0 0.0
    %169 = vmatpush1.msra.mxu0 %v145
    %170 = vmatprep.subr.mxu0 0.0
    %171 = vmatpush1.msra.mxu0 %v146
    %172 = vmatprep.subr.mxu0 0.0
    %173 = vmatpush1.msra.mxu0 %v147
    %174 = vmatprep.subr.mxu0 0.0
    %175 = vmatpush1.msra.mxu0 %v148
    %176 = vmatprep.subr.mxu0 0.0
    %177 = vmatpush1.msra.mxu0 %v149
    %178 = vmatprep.subr.mxu0 0.0
    %179 = vmatpush1.msra.mxu0 %v150
    %180 = vmatprep.subr.mxu0 0.0
    %181 = vmatpush1.msra.mxu0 0.0
    %182 = vmatprep.subr.mxu0 0.0
    %183 = vmatpush1.msra.mxu0 0.0
    %184 = vmatprep.subr.mxu0 0.0
    %185 = vmatpush1.msra.mxu0 0.0
    %186 = vmatprep.subr.mxu0 0.0
    %187 = vmatpush1.msra.mxu0 0.0
    %188 = vmatprep.subr.mxu0 0.0
    %189 = vmatpush1.msra.mxu0 0.0
    %190 = vmatprep.subr.mxu0 0.0
    %191 = vmatpush1.msra.mxu0 0.0
    %192 = vmatprep.subr.mxu0 0.0
    %193 = vmatpush1.msra.mxu0 0.0
    %194 = vmatprep.subr.mxu0 0.0
    %195 = vmatpush1.msra.mxu0 0.0
    %196 = vmatprep.subr.mxu0 0.0
    %197 = vmatpush1.msra.mxu0 0.0
    %198 = vmatprep.subr.mxu0 0.0
    %199 = vmatpush1.msra.mxu0 0.0
    %200 = vmatprep.subr.mxu0 0.0
    %201 = vmatpush1.msra.mxu0 0.0
    %202 = vmatprep.subr.mxu0 0.0
    %203 = vmatpush1.msra.mxu0 0.0
    %204 = vmatprep.subr.mxu0 0.0
    %205 = vmatpush1.msra.mxu0 0.0
    %206 = vmatprep.subr.mxu0 0.0
    %207 = vmatpush1.msra.mxu0 0.0
    %208 = vmatprep.subr.mxu0 0.0
    %209 = vmatpush1.msra.mxu0 0.0
    %210 = vmatprep.subr.mxu0 0.0
    %211 = vmatpush1.msra.mxu0 0.0
    %212 = vmatprep.subr.mxu0 0.0
    %213 = vmatpush1.msra.mxu0 0.0
    %214 = vmatprep.subr.mxu0 0.0
    %215 = vmatpush1.msra.mxu0 0.0
    %216 = vmatprep.subr.mxu0 0.0
    %217 = vmatpush1.msra.mxu0 0.0
    %218 = vmatprep.subr.mxu0 0.0
    %219 = vmatpush1.msra.mxu0 0.0
    %220 = vmatprep.subr.mxu0 0.0
    %221 = vmatpush1.msra.mxu0 0.0
    %222 = vmatprep.subr.mxu0 0.0
    %223 = vmatpush1.msra.mxu0 0.0
    %224 = vmatprep.subr.mxu0 0.0
    %225 = vmatpush1.msra.mxu0 0.0
    %226 = vmatprep.subr.mxu0 0.0
    %227 = vmatpush1.msra.mxu0 0.0
    %228 = vmatprep.mubr.f32.mxu0 0.0
    %229 = vmatmul.mubr.f32.gmra.mrb[0].mxu0 %v159
    %v230 = vpop.f32.mrb[0].mxu0
    %v231 = vadd.f32 %v155, %v230
    %v232 = vpop.f32.mrb[0].mxu0
    %233 = vmatprep.mubr.f32.mxu0 0.0
    %234 = vmatmul.mubr.f32.gmra.mrb[0].mxu0 %v162
    %v235 = vpop.f32.mrb[0].mxu0
    %v236 = vadd.f32 %v155, %v235
    %v237 = vpop.f32.mrb[0].mxu0
    %238 = vdwg.mxu0
    %v239 = vadd.f32 %v231, %v27
    %v240 = vadd.f32 %v236, %v28
    %v241 = vsel %vm43, %v239, 0.0
    %242 = vadd.xlane.f32.xlu0 %v241
    %v243 = vpop.xlane.xlu0 %242
    %v244 = vsel %vm43, %v240, 0.0
    %245 = vadd.xlane.f32.xlu0 %v244
    %v246 = vpop.xlane.xlu0 %245
    %v247 = vrcp.pop 32.0
    %v248 = vmul.f32 %v243, %v247
    %v249 = vmul.f32 %v246, %v247
    %v250 = vsub.f32 %v239, %v248
    %v251 = vsub.f32 %v240, %v249
    %v252 = vmul.f32 %v250, %v250
    %v253 = vmul.f32 %v251, %v251
    %v254 = vsel %vm43, %v252, 0.0
    %255 = vadd.xlane.f32.xlu0 %v254
    %v256 = vpop.xlane.xlu0 %255
    %v257 = vsel %vm43, %v253, 0.0
    %258 = vadd.xlane.f32.xlu0 %v257
    %v259 = vpop.xlane.xlu0 %258
    %v260 = vmul.f32 %v256, %v247
    %v261 = vmul.f32 %v259, %v247
    %v262 = vadd.f32 %v260, 1e-06
    %v263 = vadd.f32 %v261, 1e-06
    %v264 = vrsqrt.pop %v262
    %v265 = vrsqrt.pop %v263
    %v266 = vmul.f32 %v250, %v264
    %v267 = vmul.f32 %v251, %v265
    %v269 = vlaneseq
    %v270 = vshrl.u32 %v269, 7
    %v271 = vsub.s32 0, %v270
    %v272 = vrot.slane %v31, %v271
    %v274 = vmul.f32 %v266, %v272
    %v275 = vmul.f32 %v267, %v272
    %v277 = vlaneseq
    %v278 = vshrl.u32 %v277, 7
    %v279 = vsub.s32 0, %v278
    %v280 = vrot.slane %v32, %v279
    %v282 = vadd.f32 %v274, %v280
    %v283 = vadd.f32 %v275, %v280
    %284 = vst.msk [vmem:[#allocation2] sm:$0xff] %vm43, %v282
    %285 = vst.msk [vmem:[#allocation2 + $0x8] sm:$0xff] %vm43, %v283
    // Predicated region
    $region30: #{tpu_custom_call.1} parent=1 // pred_check
      _
    $region31: #{tpu_custom_call.1} parent=1 // pred_check_branch
      %287 = sbr.rel (0) target = $region33
    $region32: #{tpu_custom_call.1} parent=1 // pred_region
      %s289 = ssub.s32 256, 256
      %290 = vsyncadd [#allocation3], %s289
      %s291 = sshll.u32 [#allocation2], 4
      %s292 = int_to_ptr.vmem [resolvable:$true] %s291
      %297 = dma.vmem_to_hbm [thread:$0]  %s292, 256, %s7, [#allocation3], 128, 128, 8
    $region33: #{tpu_custom_call.1} parent=1 // pred_fallthru
      _
    // Predicated region
    $region34: #{tpu_custom_call.1} parent=1 // pred_check
      _
    $region35: #{tpu_custom_call.1} parent=1 // pred_check_branch
      %299 = sbr.rel (0) target = $region37
    $region36: #{tpu_custom_call.1} parent=1 // pred_region
      %300 = dma.done [#allocation3], 256
    $region37: #{tpu_custom_call.1} parent=1 // pred_fallthru
      _
    %301 = vsyncpa [#allocation3], 1

</llo_original>
